<compile_context>
chip_gen: v7x
topology: tpu7x:2x2x1
jax: 0.10.0
libtpu: 0.0.40
codegen_flags: <defaults>
</compile_context>

<pallas_src>
import jax
import jax.numpy as jnp
from jax.experimental import pallas as pl
from jax.experimental.pallas import tpu as pltpu

LANE = 128


def _round_up(n, m):
    return ((n + m - 1) // m) * m


def decoder_unit_kernel(
    x_ref,      # (B, T, X)            VMEM : encoder features
    s_ref,      # (B, S_pad)           VMEM : prev hidden, zero-padded lanes >= S
    yemb_ref,   # (B, A)               VMEM : gathered target embedding rows
    watt_ref,   # (X + S_pad, A)       VMEM : [xEmbed^T ; sEmbed^T (padded rows)]
    wgi_ref,    # (A_pad + X_pad, 3*S_pad) VMEM : merged GRU input weights
    wgh_ref,    # (S_pad, 3*S_pad)     VMEM : merged GRU hidden weights
    wfc_ref,    # (S_pad, Y_pad)       VMEM : fc weight^T, lane/row padded
    bias_ref,   # (8, 3*S_pad)         VMEM : packed biases + wEmbed row
    out_ref,    # (B, Y_pad)           lane-dense logits slab (valid cols [:Y])
    state_ref,  # (B, S_pad)           new hidden (aliased with s_ref's buffer)
):
    x = x_ref[...]                       # (B, T, X)
    s = s_ref[...]                       # (B, S_pad)
    y_emb = yemb_ref[...]                # (B, A)
    B, T, X = x.shape
    S_pad = s.shape[-1]
    A = y_emb.shape[-1]
    A_pad = _round_up(A, LANE)
    X_pad = _round_up(X, LANE)
    Y_pad = out_ref.shape[-1]

    # ---------------- AttentionUnit ----------------
    wx = watt_ref[0:X, :]                # (X, A)
    ws = watt_ref[X:, :]                 # (S_pad, A), rows >= S are zero
    bx = bias_ref[0:1, 0:A]              # (1, A)
    bs = bias_ref[1:2, 0:A]              # (1, A)
    ww = bias_ref[2:3, 0:A]              # (1, A)   wEmbed weight row
    bw = bias_ref[3:4, 0:1]              # (1, 1)   wEmbed bias

    # Single flat 2-D dot for the x projection (one MXU push).
    if T % 8 == 0:
        x_proj = jnp.dot(x.reshape(B * T, X), wx,
                         preferred_element_type=jnp.float32).reshape(B, T, A)
    else:
        x_proj = jnp.einsum("btx,xa->bta", x, wx,
                            preferred_element_type=jnp.float32)
    s_proj = jnp.dot(s, ws, preferred_element_type=jnp.float32) + bs    # (B, A)
    summed = jnp.tanh(x_proj + bx.reshape(1, 1, A) + s_proj[:, None, :])  # (B,T,A)

    # Attention score on VPU/XLU (no N=1 MXU pushes): v[b,t] = <summed, ww> + bw
    v = jnp.sum(summed * ww.reshape(1, 1, A), axis=-1) + bw              # (B, T)

    # Softmax over T; exact reciprocal (denominator is only (B, 1)).
    v_max = jnp.max(v, axis=-1, keepdims=True)
    e = jnp.exp(v - v_max)
    alpha = e / jnp.sum(e, axis=-1, keepdims=True)                       # (B, T)

    # Context on VPU + sublane reduce: context[b,:] = sum_t alpha[b,t] * x[b,t,:]
    context = jnp.sum(alpha[:, :, None] * x, axis=1)                     # (B, X)

    # ---------------- single-step GRU: 2 merged lane-aligned dots ----------------
    # GRU input slab, lane-aligned: y_emb at lanes [0:A], context at [A_pad:A_pad+X].
    pieces = [y_emb]
    if A_pad > A:
        pieces.append(jnp.zeros((B, A_pad - A), jnp.float32))
    pieces.append(context)
    if X_pad > X:
        pieces.append(jnp.zeros((B, X_pad - X), jnp.float32))
    in_slab = jnp.concatenate(pieces, axis=-1)                           # (B, A_pad+X_pad)

    bih = bias_ref[4:5, :]                                               # (1, 3*S_pad)
    bhh = bias_ref[5:6, :]                                               # (1, 3*S_pad)
    gi = jnp.dot(in_slab, wgi_ref[...],
                 preferred_element_type=jnp.float32) + bih               # (B, 3*S_pad)
    gh = jnp.dot(s, wgh_ref[...],
                 preferred_element_type=jnp.float32) + bhh               # (B, 3*S_pad)

    # Per-gate slices at lane-aligned offsets 0 / S_pad / 2*S_pad (free).
    r = jax.nn.sigmoid(gi[:, 0:S_pad] + gh[:, 0:S_pad])
    z = jax.nn.sigmoid(gi[:, S_pad:2 * S_pad] + gh[:, S_pad:2 * S_pad])
    n = jnp.tanh(gi[:, 2 * S_pad:] + r * gh[:, 2 * S_pad:])
    # Padded lanes: gi=gh=0, s=0 -> h stays 0 there; invariant across steps.
    h = (1.0 - z) * n + z * s                                            # (B, S_pad)

    state_ref[...] = h.astype(state_ref.dtype)                           # in place

    # ---------------- fc (lane-dense, Y_pad-wide) ----------------
    out = (jnp.dot(h, wfc_ref[...], preferred_element_type=jnp.float32)
           + bias_ref[6:7, 0:Y_pad])                                     # (B, Y_pad)
    out_ref[...] = out.astype(out_ref.dtype)


def decoder_unit_forward(x, s_prev, y_prev, params):
    """x: (B,T,X) f32, s_prev: (1,B,S) f32, y_prev: (B,) int -> (out (B,Y), state (1,B,S))."""
    B, T, X = x.shape
    S = s_prev.shape[-1]
    y_dim = params["y_dim"]
    S_pad = params["S_pad"]
    Y_pad = params["Y_pad"]

    s = s_prev[0]                                        # (B, S)
    s_pad = jnp.zeros((B, S_pad), jnp.float32).at[:, :S].set(s)
    # Embedding gather hoisted out of the kernel: no (Y+1, A) table in VMEM.
    y_emb = params["Wemb"][y_prev.astype(jnp.int32)]     # (B, A)

    vmem = pltpu.MemorySpace.VMEM
    out_pad, state_pad = pl.pallas_call(
        decoder_unit_kernel,
        out_shape=(
            jax.ShapeDtypeStruct((B, Y_pad), jnp.float32),   # lane-dense logits slab
            jax.ShapeDtypeStruct((B, S_pad), jnp.float32),   # new hidden (padded)
        ),
        in_specs=[
            pl.BlockSpec(memory_space=vmem),    # x
            pl.BlockSpec(memory_space=vmem),    # s_pad  (aliased with state output)
            pl.BlockSpec(memory_space=vmem),    # y_emb
            pl.BlockSpec(memory_space=vmem),    # Watt
            pl.BlockSpec(memory_space=vmem),    # Wgi (merged GRU input weights)
            pl.BlockSpec(memory_space=vmem),    # Wgh (merged GRU hidden weights)
            pl.BlockSpec(memory_space=vmem),    # Wfc (padded)
            pl.BlockSpec(memory_space=vmem),    # bias pack
        ],
        out_specs=(pl.BlockSpec(memory_space=vmem),
                   pl.BlockSpec(memory_space=vmem)),
        # s_pad is a wrapper-created temporary, so donating it is always safe.
        input_output_aliases={1: 1},
        compiler_params=pltpu.CompilerParams(vmem_limit_bytes=32 * 1024 * 1024),
    )(x, s_pad, y_emb, params["Watt"], params["Wgi"], params["Wgh"],
      params["Wfc_pad"], params["bias_pack"])

    return out_pad[:, :y_dim], state_pad[None, :, :S]     # state -> (1, B, S)


def init_params(key, s_dim, x_dim, y_dim, att_dim):
    emd_dim = att_dim
    in_dim = x_dim + emd_dim
    S_pad = _round_up(s_dim, LANE)
    A_pad = _round_up(emd_dim, LANE)
    X_pad = _round_up(x_dim, LANE)
    Y_pad = _round_up(y_dim, LANE)

    ks = jax.random.split(key, 9)
    normal = lambda k, shp: (0.01 * jax.random.normal(k, shp)).astype(jnp.float32)
    bound = 1.0 / (s_dim ** 0.5)
    uni = lambda k, shp: jax.random.uniform(
        k, shp, minval=-bound, maxval=bound, dtype=jnp.float32)

    # PyTorch Linear weights are (out, in); store transposed so the kernel does x @ W.
    Wx = normal(ks[0], (att_dim, x_dim)).T              # (X, A)
    Ws = normal(ks[1], (att_dim, s_dim)).T              # (S, A)
    ww = normal(ks[2], (1, att_dim))                    # (1, A)
    Wemb = normal(ks[3], (y_dim + 1, emd_dim))          # (Y+1, A)
    Wfc = normal(ks[4], (y_dim, s_dim)).T               # (S, Y)
    weight_ih = uni(ks[5], (3 * s_dim, in_dim))         # gates r,z,n ; cols [emb | ctx]
    weight_hh = uni(ks[6], (3 * s_dim, s_dim))
    bias_ih = uni(ks[7], (3 * s_dim,))
    bias_hh = uni(ks[8], (3 * s_dim,))
    bx = jnp.zeros((att_dim,), jnp.float32)
    bs = jnp.zeros((att_dim,), jnp.float32)
    bw = jnp.zeros((1,), jnp.float32)
    bfc = jnp.zeros((y_dim,), jnp.float32)

    # ---- kernel-packed layouts ----
    # Attention weights: [Wx^T rows ; Ws^T rows padded to S_pad].
    Watt = jnp.zeros((x_dim + S_pad, att_dim), jnp.float32)
    Watt = Watt.at[:x_dim].set(Wx)
    Watt = Watt.at[x_dim:x_dim + s_dim].set(Ws)

    # Merged GRU weights: gate g's output columns at lanes [g*S_pad, g*S_pad+S).
    Wih_g = weight_ih.reshape(3, s_dim, in_dim)          # (3, S, A+X)
    Whh_g = weight_hh.reshape(3, s_dim, s_dim)           # (3, S, S)
    Wgi = jnp.zeros((A_pad + X_pad, 3 * S_pad), jnp.float32)
    Wgh = jnp.zeros((S_pad, 3 * S_pad), jnp.float32)
    bias_pack = jnp.zeros((8, 3 * S_pad), jnp.float32)
    for g in range(3):
        c0 = g * S_pad
        Wgi = Wgi.at[0:emd_dim, c0:c0 + s_dim].set(Wih_g[g, :, :emd_dim].T)     # emb part
        Wgi = Wgi.at[A_pad:A_pad + x_dim, c0:c0 + s_dim].set(Wih_g[g, :, emd_dim:].T)  # ctx part
        Wgh = Wgh.at[0:s_dim, c0:c0 + s_dim].set(Whh_g[g].T)
        bias_pack = bias_pack.at[4, c0:c0 + s_dim].set(bias_ih[g * s_dim:(g + 1) * s_dim])
        bias_pack = bias_pack.at[5, c0:c0 + s_dim].set(bias_hh[g * s_dim:(g + 1) * s_dim])

    Wfc_pad = jnp.zeros((S_pad, Y_pad), jnp.float32).at[:s_dim, :y_dim].set(Wfc)

    bias_pack = bias_pack.at[0, :att_dim].set(bx)
    bias_pack = bias_pack.at[1, :att_dim].set(bs)
    bias_pack = bias_pack.at[2, :att_dim].set(ww[0])
    bias_pack = bias_pack.at[3, 0].set(bw[0])
    bias_pack = bias_pack.at[6, :y_dim].set(bfc)

    return {
        "y_dim": y_dim, "s_dim": s_dim, "S_pad": S_pad, "Y_pad": Y_pad,
        # packed operands for the kernel
        "Watt": Watt, "Wgi": Wgi, "Wgh": Wgh, "Wfc_pad": Wfc_pad,
        "bias_pack": bias_pack, "Wemb": Wemb,
        # raw weights for the pure-JAX reference
        "Wx": Wx, "bx": bx, "Ws": Ws, "bs": bs, "ww": ww, "bw": bw,
        "Wih": weight_ih, "Whh": weight_hh, "bih": bias_ih, "bhh": bias_hh,
        "Wfc": Wfc, "bfc": bfc,
    }


def reference_forward(x, s_prev, y_prev, params, s_dim):
    """Pure-JAX reference mirroring the PyTorch module."""
    s = s_prev[0]
    x_proj = x @ params["Wx"] + params["bx"]
    s_proj = s @ params["Ws"] + params["bs"]
    summed = jnp.tanh(x_proj + s_proj[:, None, :])
    v = jnp.einsum("bta,a->bt", summed, params["ww"][0]) + params["bw"][0]
    alpha = jax.nn.softmax(v, axis=1)
    context = jnp.einsum("bt,btx->bx", alpha, x)
    y_emb = params["Wemb"][y_prev]
    gru_in = jnp.concatenate([y_emb, context], axis=1)
    gi = gru_in @ params["Wih"].T + params["bih"]
    gh = s @ params["Whh"].T + params["bhh"]
    S = s_dim
    r = jax.nn.sigmoid(gi[:, :S] + gh[:, :S])
    z = jax.nn.sigmoid(gi[:, S:2 * S] + gh[:, S:2 * S])
    n = jnp.tanh(gi[:, 2 * S:] + r * gh[:, 2 * S:])
    h = (1.0 - z) * n + z * s
    out = h @ params["Wfc"] + params["bfc"]
    return out, h[None]


if __name__ == "__main__":
    B, T = 2, 8
    s_dim, x_dim, y_dim, att_dim = 32, 32, 16, 32

    key = jax.random.PRNGKey(0)
    kx, ks, ky, kp = jax.random.split(key, 4)
    x = jax.random.normal(kx, (B, T, x_dim), dtype=jnp.float32)
    s_prev = jax.random.normal(ks, (1, B, s_dim), dtype=jnp.float32)
    y_prev = jax.random.randint(ky, (B,), 0, y_dim + 1, dtype=jnp.int32)
    params = init_params(kp, s_dim, x_dim, y_dim, att_dim)

    out, state = decoder_unit_forward(x, s_prev, y_prev, params)
    out = jax.block_until_ready(out)
    state = jax.block_until_ready(state)

    ref_out, ref_state = reference_forward(x, s_prev, y_prev, params, s_dim)
    assert out.shape == (B, y_dim) and state.shape == (1, B, s_dim)
    # Exact softmax reciprocal restored -> f32-tight tolerances.
    assert jnp.allclose(out, ref_out, atol=1e-4, rtol=1e-4)
    assert jnp.allclose(state, ref_state, atol=1e-4, rtol=1e-4)

    print("KERNEL_OK")
</pallas_src>

<mosaic_0001>
module attributes {stable_mosaic.version = 11 : i64} {
  func.func @decoder_unit_kernel(%arg0: memref<2x8x32xf32, #tpu.memory_space<vmem>>, %arg1: memref<2x128xf32, #tpu.memory_space<vmem>>, %arg2: memref<2x32xf32, #tpu.memory_space<vmem>>, %arg3: memref<160x32xf32, #tpu.memory_space<vmem>>, %arg4: memref<256x384xf32, #tpu.memory_space<vmem>>, %arg5: memref<128x384xf32, #tpu.memory_space<vmem>>, %arg6: memref<128x128xf32, #tpu.memory_space<vmem>>, %arg7: memref<8x384xf32, #tpu.memory_space<vmem>>, %arg8: memref<2x128xf32, #tpu.memory_space<vmem>>, %arg9: memref<2x128xf32, #tpu.memory_space<vmem>>) attributes {dimension_semantics = [], scalar_prefetch = 0 : i64, scratch_operands = 0 : i64, tpu.core_type = #tpu.core_type<tc>} {
    %c0 = arith.constant 0 : index
    %c0_0 = arith.constant 0 : index
    %c0_1 = arith.constant 0 : index
    %0 = vector.load %arg0[%c0, %c0_0, %c0_1] : memref<2x8x32xf32, #tpu.memory_space<vmem>>, vector<2x8x32xf32>
    %c0_2 = arith.constant 0 : index
    %c0_3 = arith.constant 0 : index
    %1 = vector.load %arg1[%c0_2, %c0_3] : memref<2x128xf32, #tpu.memory_space<vmem>>, vector<2x128xf32>
    %c0_4 = arith.constant 0 : index
    %c0_5 = arith.constant 0 : index
    %2 = vector.load %arg2[%c0_4, %c0_5] : memref<2x32xf32, #tpu.memory_space<vmem>>, vector<2x32xf32>
    %c0_6 = arith.constant 0 : index
    %c0_7 = arith.constant 0 : index
    %3 = vector.load %arg3[%c0_6, %c0_7] : memref<160x32xf32, #tpu.memory_space<vmem>>, vector<32x32xf32>
    %c32 = arith.constant 32 : index
    %c0_8 = arith.constant 0 : index
    %4 = vector.load %arg3[%c32, %c0_8] : memref<160x32xf32, #tpu.memory_space<vmem>>, vector<128x32xf32>
    %c0_9 = arith.constant 0 : index
    %c0_10 = arith.constant 0 : index
    %5 = vector.load %arg7[%c0_9, %c0_10] : memref<8x384xf32, #tpu.memory_space<vmem>>, vector<1x32xf32>
    %c1 = arith.constant 1 : index
    %c0_11 = arith.constant 0 : index
    %6 = vector.load %arg7[%c1, %c0_11] : memref<8x384xf32, #tpu.memory_space<vmem>>, vector<1x32xf32>
    %c2 = arith.constant 2 : index
    %c0_12 = arith.constant 0 : index
    %7 = vector.load %arg7[%c2, %c0_12] : memref<8x384xf32, #tpu.memory_space<vmem>>, vector<1x32xf32>
    %c3 = arith.constant 3 : index
    %c0_13 = arith.constant 0 : index
    %8 = vector.load %arg7[%c3, %c0_13] : memref<8x384xf32, #tpu.memory_space<vmem>>, vector<1x1xf32>
    %9 = vector.shape_cast %0 : vector<2x8x32xf32> to vector<16x32xf32>
    %cst = arith.constant dense<0.000000e+00> : vector<16x32xf32>
    %10 = tpu.matmul %9, %3, %cst {dimension_numbers = #tpu.dot_dimension_numbers<[1], [0], [0], [1], [0, 0, 1, 1], [], []>} : vector<16x32xf32>, vector<32x32xf32>, vector<16x32xf32> -> vector<16x32xf32>
    %11 = vector.shape_cast %10 : vector<16x32xf32> to vector<2x8x32xf32>
    %cst_14 = arith.constant dense<0.000000e+00> : vector<2x32xf32>
    %12 = tpu.matmul %1, %4, %cst_14 {dimension_numbers = #tpu.dot_dimension_numbers<[1], [0], [0], [1], [0, 0, 1, 1], [], []>} : vector<2x128xf32>, vector<128x32xf32>, vector<2x32xf32> -> vector<2x32xf32>
    %13 = vector.broadcast %6 : vector<1x32xf32> to vector<2x32xf32>
    %14 = arith.addf %12, %13 : vector<2x32xf32>
    %15 = vector.shape_cast %5 : vector<1x32xf32> to vector<1x1x32xf32>
    %16 = vector.broadcast %15 : vector<1x1x32xf32> to vector<2x8x32xf32>
    %17 = arith.addf %11, %16 : vector<2x8x32xf32>
    %18 = vector.shape_cast %14 : vector<2x32xf32> to vector<2x1x32xf32>
    %19 = vector.broadcast %18 : vector<2x1x32xf32> to vector<2x8x32xf32>
    %20 = arith.addf %17, %19 : vector<2x8x32xf32>
    %21 = math.tanh %20 : vector<2x8x32xf32>
    %22 = vector.shape_cast %7 : vector<1x32xf32> to vector<1x1x32xf32>
    %23 = vector.broadcast %22 : vector<1x1x32xf32> to vector<2x8x32xf32>
    %24 = arith.mulf %21, %23 : vector<2x8x32xf32>
    %cst_15 = arith.constant dense<0.000000e+00> : vector<2x8xf32>
    %25 = vector.multi_reduction <add>, %24, %cst_15 [2] : vector<2x8x32xf32> to vector<2x8xf32>
    %26 = vector.broadcast %8 : vector<1x1xf32> to vector<2x8xf32>
    %27 = arith.addf %25, %26 : vector<2x8xf32>
    %cst_16 = arith.constant dense<0xFF800000> : vector<2xf32>
    %28 = vector.multi_reduction <maximumf>, %27, %cst_16 [1] : vector<2x8xf32> to vector<2xf32>
    %29 = vector.shape_cast %28 : vector<2xf32> to vector<2x1xf32>
    %30 = vector.broadcast %29 : vector<2x1xf32> to vector<2x8xf32>
    %31 = arith.subf %27, %30 : vector<2x8xf32>
    %32 = math.exp %31 : vector<2x8xf32>
    %cst_17 = arith.constant dense<0.000000e+00> : vector<2xf32>
    %33 = vector.multi_reduction <add>, %32, %cst_17 [1] : vector<2x8xf32> to vector<2xf32>
    %34 = vector.shape_cast %33 : vector<2xf32> to vector<2x1xf32>
    %35 = vector.broadcast %34 : vector<2x1xf32> to vector<2x8xf32>
    %36 = arith.divf %32, %35 : vector<2x8xf32>
    %37 = vector.shape_cast %36 : vector<2x8xf32> to vector<2x8x1xf32>
    %38 = vector.broadcast %37 : vector<2x8x1xf32> to vector<2x8x32xf32>
    %39 = arith.mulf %38, %0 : vector<2x8x32xf32>
    %cst_18 = arith.constant dense<0.000000e+00> : vector<2x32xf32>
    %40 = vector.multi_reduction <add>, %39, %cst_18 [1] : vector<2x8x32xf32> to vector<2x32xf32>
    %cst_19 = arith.constant 0.000000e+00 : f32
    %41 = vector.broadcast %cst_19 : f32 to vector<2x96xf32>
    %cst_20 = arith.constant 0.000000e+00 : f32
    %42 = vector.broadcast %cst_20 : f32 to vector<2x96xf32>
    %43 = tpu.concatenate %2, %41, %40, %42 in 1 : vector<2x32xf32>, vector<2x96xf32>, vector<2x32xf32>, vector<2x96xf32> -> vector<2x256xf32>
    %c4 = arith.constant 4 : index
    %c0_21 = arith.constant 0 : index
    %44 = vector.load %arg7[%c4, %c0_21] : memref<8x384xf32, #tpu.memory_space<vmem>>, vector<1x384xf32>
    %c5 = arith.constant 5 : index
    %c0_22 = arith.constant 0 : index
    %45 = vector.load %arg7[%c5, %c0_22] : memref<8x384xf32, #tpu.memory_space<vmem>>, vector<1x384xf32>
    %c0_23 = arith.constant 0 : index
    %c0_24 = arith.constant 0 : index
    %46 = vector.load %arg4[%c0_23, %c0_24] : memref<256x384xf32, #tpu.memory_space<vmem>>, vector<256x384xf32>
    %cst_25 = arith.constant dense<0.000000e+00> : vector<2x384xf32>
    %47 = tpu.matmul %43, %46, %cst_25 {dimension_numbers = #tpu.dot_dimension_numbers<[1], [0], [0], [1], [0, 0, 1, 1], [], []>} : vector<2x256xf32>, vector<256x384xf32>, vector<2x384xf32> -> vector<2x384xf32>
    %48 = vector.broadcast %44 : vector<1x384xf32> to vector<2x384xf32>
    %49 = arith.addf %47, %48 : vector<2x384xf32>
    %c0_26 = arith.constant 0 : index
    %c0_27 = arith.constant 0 : index
    %50 = vector.load %arg5[%c0_26, %c0_27] : memref<128x384xf32, #tpu.memory_space<vmem>>, vector<128x384xf32>
    %cst_28 = arith.constant dense<0.000000e+00> : vector<2x384xf32>
    %51 = tpu.matmul %1, %50, %cst_28 {dimension_numbers = #tpu.dot_dimension_numbers<[1], [0], [0], [1], [0, 0, 1, 1], [], []>} : vector<2x128xf32>, vector<128x384xf32>, vector<2x384xf32> -> vector<2x384xf32>
    %52 = vector.broadcast %45 : vector<1x384xf32> to vector<2x384xf32>
    %53 = arith.addf %51, %52 : vector<2x384xf32>
    %54 = vector.extract_strided_slice %49 {offsets = [0, 0], sizes = [2, 128], strides = [1, 1]} : vector<2x384xf32> to vector<2x128xf32>
    %55 = vector.extract_strided_slice %53 {offsets = [0, 0], sizes = [2, 128], strides = [1, 1]} : vector<2x384xf32> to vector<2x128xf32>
    %56 = arith.addf %54, %55 : vector<2x128xf32>
    %57 = arith.negf %56 : vector<2x128xf32>
    %58 = math.exp %57 : vector<2x128xf32>
    %cst_29 = arith.constant 1.000000e+00 : f32
    %59 = vector.broadcast %cst_29 : f32 to vector<2x128xf32>
    %60 = arith.addf %59, %58 : vector<2x128xf32>
    %61 = arith.divf %59, %60 : vector<2x128xf32>
    %62 = vector.extract_strided_slice %49 {offsets = [0, 128], sizes = [2, 128], strides = [1, 1]} : vector<2x384xf32> to vector<2x128xf32>
    %63 = vector.extract_strided_slice %53 {offsets = [0, 128], sizes = [2, 128], strides = [1, 1]} : vector<2x384xf32> to vector<2x128xf32>
    %64 = arith.addf %62, %63 : vector<2x128xf32>
    %65 = arith.negf %64 : vector<2x128xf32>
    %66 = math.exp %65 : vector<2x128xf32>
    %cst_30 = arith.constant 1.000000e+00 : f32
    %67 = vector.broadcast %cst_30 : f32 to vector<2x128xf32>
    %68 = arith.addf %67, %66 : vector<2x128xf32>
    %69 = arith.divf %67, %68 : vector<2x128xf32>
    %70 = vector.extract_strided_slice %49 {offsets = [0, 256], sizes = [2, 128], strides = [1, 1]} : vector<2x384xf32> to vector<2x128xf32>
    %71 = vector.extract_strided_slice %53 {offsets = [0, 256], sizes = [2, 128], strides = [1, 1]} : vector<2x384xf32> to vector<2x128xf32>
    %72 = arith.mulf %61, %71 : vector<2x128xf32>
    %73 = arith.addf %70, %72 : vector<2x128xf32>
    %74 = math.tanh %73 : vector<2x128xf32>
    %cst_31 = arith.constant 1.000000e+00 : f32
    %75 = vector.broadcast %cst_31 : f32 to vector<2x128xf32>
    %76 = arith.subf %75, %69 : vector<2x128xf32>
    %77 = arith.mulf %76, %74 : vector<2x128xf32>
    %78 = arith.mulf %69, %1 : vector<2x128xf32>
    %79 = arith.addf %77, %78 : vector<2x128xf32>
    %c0_32 = arith.constant 0 : index
    %c0_33 = arith.constant 0 : index
    %80 = vector.load %arg9[%c0_32, %c0_33] : memref<2x128xf32, #tpu.memory_space<vmem>>, vector<2x128xf32>
    tpu.vector_store %arg9[%c0_32, %c0_33], %79 {strides = array<i32>} : memref<2x128xf32, #tpu.memory_space<vmem>>, vector<2x128xf32>,
    %c0_34 = arith.constant 0 : index
    %c0_35 = arith.constant 0 : index
    %81 = vector.load %arg6[%c0_34, %c0_35] : memref<128x128xf32, #tpu.memory_space<vmem>>, vector<128x128xf32>
    %cst_36 = arith.constant dense<0.000000e+00> : vector<2x128xf32>
    %82 = tpu.matmul %79, %81, %cst_36 {dimension_numbers = #tpu.dot_dimension_numbers<[1], [0], [0], [1], [0, 0, 1, 1], [], []>} : vector<2x128xf32>, vector<128x128xf32>, vector<2x128xf32> -> vector<2x128xf32>
    %c6 = arith.constant 6 : index
    %c0_37 = arith.constant 0 : index
    %83 = vector.load %arg7[%c6, %c0_37] : memref<8x384xf32, #tpu.memory_space<vmem>>, vector<1x128xf32>
    %84 = vector.broadcast %83 : vector<1x128xf32> to vector<2x128xf32>
    %85 = arith.addf %82, %84 : vector<2x128xf32>
    %c0_38 = arith.constant 0 : index
    %c0_39 = arith.constant 0 : index
    %86 = vector.load %arg8[%c0_38, %c0_39] : memref<2x128xf32, #tpu.memory_space<vmem>>, vector<2x128xf32>
    tpu.vector_store %arg8[%c0_38, %c0_39], %85 {strides = array<i32>} : memref<2x128xf32, #tpu.memory_space<vmem>>, vector<2x128xf32>,
    return
  }
}

</mosaic_0001>

<llo_original>
// kernel: tpu_custom_call.1
$region0: #{tpu_custom_call.1}
  #allocation0 [shape = 'u32[]', space=smem, size = 0x4, offset = 0x4, fixed_abs, tag = 'smem constant byte address 0x4 - core index']
  #allocation1 [shape = 'u32[144,128]{1,0:T(1,128)}', space=vmem, size = 0x12000, scoped, tag = 'internal scratch']
  %s0 = inlined_call_operand.vmem [shape: f32[2,8,32], index: 0, kind: input, shape index: {}]
  %s1 = inlined_call_operand.hbm [shape: f32[2,128], index: 1, kind: input, shape index: {}, may-alias: {1,9}]
  %s2 = inlined_call_operand.vmem [shape: f32[2,32], index: 2, kind: input, shape index: {}]
  %s3 = inlined_call_operand.vmem [shape: f32[160,32], index: 3, kind: input, shape index: {}]
  %s4 = inlined_call_operand.hbm [shape: f32[256,384], index: 4, kind: input, shape index: {}]
  %s5 = inlined_call_operand.hbm [shape: f32[128,384], index: 5, kind: input, shape index: {}]
  %s6 = inlined_call_operand.vmem [shape: f32[128,128], index: 6, kind: input, shape index: {}]
  %s7 = inlined_call_operand.vmem [shape: f32[8,384], index: 7, kind: input, shape index: {}]
  %s8 = inlined_call_operand.hbm [shape: f32[2,128], index: 8, kind: output, shape index: {0}]
  %s9 = inlined_call_operand.hbm [shape: f32[2,128], index: 9, kind: output, shape index: {1}, may-alias: {1,9}]
  %10 = xla_tuple %s8, %s9
  %s11 = sld [smem:[#allocation0]]
  $region62: #{tpu_custom_call.1} parent=0
    _
  %s13 = ssub.s32 1, %s11
  %s14 = scalar_select 0, %s13, %s11
  $region1: #{tpu_custom_call.1} parent=0
    #allocation2 [shape = 'u8[1024]{0}', space=vmem, size = 0x400, scoped, tag = 'input window, operand 1, single buffered']
    #allocation3 [shape = 's32[1]{0}', space=sflag, size = 0x4, scoped, tag = 'scoped memory for tpu_custom_call.1']
    #allocation4 [shape = 's32[1]{0}', space=sflag, size = 0x4, scoped, tag = 'scoped memory for tpu_custom_call.1']
    #allocation5 [shape = 'u8[393216]{0}', space=vmem, size = 0x60000, scoped, tag = 'input window, operand 4, single buffered']
    #allocation6 [shape = 's32[1]{0}', space=sflag, size = 0x4, scoped, tag = 'scoped memory for tpu_custom_call.1']
    #allocation7 [shape = 'u8[196608]{0}', space=vmem, size = 0x30000, scoped, tag = 'input window, operand 5, single buffered']
    #allocation8 [shape = 'u8[1024]{0}', space=vmem, size = 0x400, scoped, tag = 'output window, operand 0, single buffered']
    #allocation9 [shape = 'u8[1024]{0}', space=vmem, size = 0x400, scoped, tag = 'output window, operand 1, single buffered']
    #allocation10 [shape = 's32[1]{0}', space=sflag, size = 0x4, scoped, tag = 'scoped memory for tpu_custom_call.1']
    %15 = vsyncpa [#allocation3], 0
    %16 = vsyncpa [#allocation6], 0
    %17 = vsyncpa [#allocation4], 0
    %18 = vsyncpa [#allocation10], 0
    // Predicated region
    $region2: #{tpu_custom_call.1} parent=1 // pred_check
      _
    $region3: #{tpu_custom_call.1} parent=1 // pred_check_branch
      %20 = sbr.rel (0) target = $region5
    $region4: #{tpu_custom_call.1} parent=1 // pred_region
      _
    $region5: #{tpu_custom_call.1} parent=1 // pred_fallthru
      _
    // Predicated region
    $region6: #{tpu_custom_call.1} parent=1 // pred_check
      _
    $region7: #{tpu_custom_call.1} parent=1 // pred_check_branch
      %22 = sbr.rel (0) target = $region9
    $region8: #{tpu_custom_call.1} parent=1 // pred_region
      %s24 = ssub.s32 32, 32
      %25 = vsyncadd [#allocation3], %s24
      %s27 = sshll.u32 [#allocation2], 4
      %s28 = int_to_ptr.vmem [resolvable:$true] %s27
      %30 = dma.hbm_to_vmem [thread:$0]  %s1, 32, %s28, [#allocation3]
    $region9: #{tpu_custom_call.1} parent=1 // pred_fallthru
      _
    // Predicated region
    $region10: #{tpu_custom_call.1} parent=1 // pred_check
      _
    $region11: #{tpu_custom_call.1} parent=1 // pred_check_branch
      %32 = sbr.rel (0) target = $region13
    $region12: #{tpu_custom_call.1} parent=1 // pred_region
      _
    $region13: #{tpu_custom_call.1} parent=1 // pred_fallthru
      _
    // Predicated region
    $region14: #{tpu_custom_call.1} parent=1 // pred_check
      _
    $region15: #{tpu_custom_call.1} parent=1 // pred_check_branch
      %34 = sbr.rel (0) target = $region17
    $region16: #{tpu_custom_call.1} parent=1 // pred_region
      _
    $region17: #{tpu_custom_call.1} parent=1 // pred_fallthru
      _
    // Predicated region
    $region18: #{tpu_custom_call.1} parent=1 // pred_check
      _
    $region19: #{tpu_custom_call.1} parent=1 // pred_check_branch
      %36 = sbr.rel (0) target = $region21
    $region20: #{tpu_custom_call.1} parent=1 // pred_region
      %s38 = ssub.s32 12288, 12288
      %39 = vsyncadd [#allocation6], %s38
      %s40 = sshll.u32 [#allocation5], 4
      %s41 = int_to_ptr.vmem [resolvable:$true] %s40
      %46 = dma.hbm_to_vmem [thread:$0]  %s4, 12288, %s41, [#allocation6], 384, 384, 24
    $region21: #{tpu_custom_call.1} parent=1 // pred_fallthru
      _
    // Predicated region
    $region22: #{tpu_custom_call.1} parent=1 // pred_check
      _
    $region23: #{tpu_custom_call.1} parent=1 // pred_check_branch
      %48 = sbr.rel (0) target = $region25
    $region24: #{tpu_custom_call.1} parent=1 // pred_region
      %s50 = ssub.s32 6144, 6144
      %51 = vsyncadd [#allocation6], %s50
      %s52 = sshll.u32 [#allocation7], 4
      %s53 = int_to_ptr.vmem [resolvable:$true] %s52
      %58 = dma.hbm_to_vmem [thread:$0]  %s5, 6144, %s53, [#allocation6], 384, 384, 24
    $region25: #{tpu_custom_call.1} parent=1 // pred_fallthru
      _
    // Predicated region
    $region26: #{tpu_custom_call.1} parent=1 // pred_check
      _
    $region27: #{tpu_custom_call.1} parent=1 // pred_check_branch
      %60 = sbr.rel (0) target = $region29
    $region28: #{tpu_custom_call.1} parent=1 // pred_region
      _
    $region29: #{tpu_custom_call.1} parent=1 // pred_fallthru
      _
    // Predicated region
    $region30: #{tpu_custom_call.1} parent=1 // pred_check
      _
    $region31: #{tpu_custom_call.1} parent=1 // pred_check_branch
      %62 = sbr.rel (0) target = $region33
    $region32: #{tpu_custom_call.1} parent=1 // pred_region
      _
    $region33: #{tpu_custom_call.1} parent=1 // pred_fallthru
      _
    // Predicated region
    $region34: #{tpu_custom_call.1} parent=1 // pred_check
      _
    $region35: #{tpu_custom_call.1} parent=1 // pred_check_branch
      %64 = sbr.rel (0) target = $region37
    $region36: #{tpu_custom_call.1} parent=1 // pred_region
      %65 = dma.done [#allocation3], 32
    $region37: #{tpu_custom_call.1} parent=1 // pred_fallthru
      _
    // Predicated region
    $region38: #{tpu_custom_call.1} parent=1 // pred_check
      _
    $region39: #{tpu_custom_call.1} parent=1 // pred_check_branch
      %67 = sbr.rel (0) target = $region41
    $region40: #{tpu_custom_call.1} parent=1 // pred_region
      %68 = dma.done [#allocation6], 12288
    $region41: #{tpu_custom_call.1} parent=1 // pred_fallthru
      _
    // Predicated region
    $region42: #{tpu_custom_call.1} parent=1 // pred_check
      _
    $region43: #{tpu_custom_call.1} parent=1 // pred_check_branch
      %70 = sbr.rel (0) target = $region45
    $region44: #{tpu_custom_call.1} parent=1 // pred_region
      %71 = dma.done [#allocation6], 6144
    $region45: #{tpu_custom_call.1} parent=1 // pred_fallthru
      _
    %v72 = vld [vmem:[%s0] sm:$0xff]
    %v73 = vld [vmem:[%s0 + $0x8] sm:$0xff]
    %v74 = vld [vmem:[#allocation2] sm:$0x3]
    %v75 = vld [vmem:[%s2] sm:$0x3]
    %v76 = vld [vmem:[%s3] sm:$0xff]
    %v77 = vld [vmem:[%s3 + $0x8] sm:$0xff]
    %v78 = vld [vmem:[%s3 + $0x10] sm:$0xff]
    %v79 = vld [vmem:[%s3 + $0x18] sm:$0xff]
    %v80 = vld [vmem:[%s3 + $0x20] sm:$0xff]
    %v81 = vld [vmem:[%s3 + $0x28] sm:$0xff]
    %v82 = vld [vmem:[%s3 + $0x30] sm:$0xff]
    %v83 = vld [vmem:[%s3 + $0x38] sm:$0xff]
    %v84 = vld [vmem:[%s3 + $0x40] sm:$0xff]
    %v85 = vld [vmem:[%s3 + $0x48] sm:$0xff]
    %v86 = vld [vmem:[%s3 + $0x50] sm:$0xff]
    %v87 = vld [vmem:[%s3 + $0x58] sm:$0xff]
    %v88 = vld [vmem:[%s3 + $0x60] sm:$0xff]
    %v89 = vld [vmem:[%s3 + $0x68] sm:$0xff]
    %v90 = vld [vmem:[%s3 + $0x70] sm:$0xff]
    %v91 = vld [vmem:[%s3 + $0x78] sm:$0xff]
    %v92 = vld [vmem:[%s3 + $0x80] sm:$0xff]
    %v93 = vld [vmem:[%s3 + $0x88] sm:$0xff]
    %v94 = vld [vmem:[%s3 + $0x90] sm:$0xff]
    %v95 = vld [vmem:[%s3 + $0x98] sm:$0xff]
    %v96 = vld [vmem:[%s7] ss:$0 sm:$0xff]
    %v97 = vld [vmem:[%s7 + $0x1] ss:$0 sm:$0xff]
    %v98 = vld [vmem:[%s7 + $0x2] ss:$0 sm:$0xff]
    %v99 = vld [vmem:[%s7 + $0x3] ss:$0 sm:$0xff]
    %vm100 = vcmask 261120
    %v102 = vsel %vm100, %v72, 0
    %v105 = vsel %vm100, %v73, 0
    %107 = vmatprep.subr.mxu0 0.0
    %108 = vmatpush1.msra.mxu0 %v76
    %109 = vmatprep.subr.mxu0 0.0
    %110 = vmatpush1.msra.mxu0 %v77
    %111 = vmatprep.subr.mxu0 0.0
    %112 = vmatpush1.msra.mxu0 %v78
    %113 = vmatprep.subr.mxu0 0.0
    %114 = vmatpush1.msra.mxu0 %v79
    %115 = vmatprep.subr.mxu0 0.0
    %116 = vmatpush1.msra.mxu0 0.0
    %117 = vmatprep.subr.mxu0 0.0
    %118 = vmatpush1.msra.mxu0 0.0
    %119 = vmatprep.subr.mxu0 0.0
    %120 = vmatpush1.msra.mxu0 0.0
    %121 = vmatprep.subr.mxu0 0.0
    %122 = vmatpush1.msra.mxu0 0.0
    %123 = vmatprep.subr.mxu0 0.0
    %124 = vmatpush1.msra.mxu0 0.0
    %125 = vmatprep.subr.mxu0 0.0
    %126 = vmatpush1.msra.mxu0 0.0
    %127 = vmatprep.subr.mxu0 0.0
    %128 = vmatpush1.msra.mxu0 0.0
    %129 = vmatprep.subr.mxu0 0.0
    %130 = vmatpush1.msra.mxu0 0.0
    %131 = vmatprep.subr.mxu0 0.0
    %132 = vmatpush1.msra.mxu0 0.0
    %133 = vmatprep.subr.mxu0 0.0
    %134 = vmatpush1.msra.mxu0 0.0
    %135 = vmatprep.subr.mxu0 0.0
    %136 = vmatpush1.msra.mxu0 0.0
    %137 = vmatprep.subr.mxu0 0.0
    %138 = vmatpush1.msra.mxu0 0.0
    %139 = vmatprep.subr.mxu0 0.0
    %140 = vmatpush1.msra.mxu0 0.0
    %141 = vmatprep.subr.mxu0 0.0
    %142 = vmatpush1.msra.mxu0 0.0
    %143 = vmatprep.subr.mxu0 0.0
    %144 = vmatpush1.msra.mxu0 0.0
    %145 = vmatprep.subr.mxu0 0.0
    %146 = vmatpush1.msra.mxu0 0.0
    %147 = vmatprep.subr.mxu0 0.0
    %148 = vmatpush1.msra.mxu0 0.0
    %149 = vmatprep.subr.mxu0 0.0
    %150 = vmatpush1.msra.mxu0 0.0
    %151 = vmatprep.subr.mxu0 0.0
    %152 = vmatpush1.msra.mxu0 0.0
    %153 = vmatprep.subr.mxu0 0.0
    %154 = vmatpush1.msra.mxu0 0.0
    %155 = vmatprep.subr.mxu0 0.0
    %156 = vmatpush1.msra.mxu0 0.0
    %157 = vmatprep.subr.mxu0 0.0
    %158 = vmatpush1.msra.mxu0 0.0
    %159 = vmatprep.subr.mxu0 0.0
    %160 = vmatpush1.msra.mxu0 0.0
    %161 = vmatprep.subr.mxu0 0.0
    %162 = vmatpush1.msra.mxu0 0.0
    %163 = vmatprep.subr.mxu0 0.0
    %164 = vmatpush1.msra.mxu0 0.0
    %165 = vmatprep.subr.mxu0 0.0
    %166 = vmatpush1.msra.mxu0 0.0
    %167 = vmatprep.subr.mxu0 0.0
    %168 = vmatpush1.msra.mxu0 0.0
    %169 = vmatprep.subr.mxu0 0.0
    %170 = vmatpush1.msra.mxu0 0.0
    %171 = vmatprep.mubr.f32.mxu0 0.0
    %172 = vmatmul.mubr.f32.gmra.mrb[0].mxu0 %v102
    %v173 = vpop.f32.mrb[0].mxu0
    %v174 = vadd.f32 0.0, %v173
    %v175 = vpop.f32.mrb[0].mxu0
    %176 = vmatprep.mubr.f32.mxu0 0.0
    %177 = vmatmul.mubr.f32.gmra.mrb[0].mxu0 %v105
    %v178 = vpop.f32.mrb[0].mxu0
    %v179 = vadd.f32 0.0, %v178
    %v180 = vpop.f32.mrb[0].mxu0
    %181 = vdwg.mxu0
    %182 = vmatprep.subr.mxu0 0.0
    %183 = vmatpush1.msra.mxu0 %v80
    %184 = vmatprep.subr.mxu0 0.0
    %185 = vmatpush1.msra.mxu0 %v81
    %186 = vmatprep.subr.mxu0 0.0
    %187 = vmatpush1.msra.mxu0 %v82
    %188 = vmatprep.subr.mxu0 0.0
    %189 = vmatpush1.msra.mxu0 %v83
    %190 = vmatprep.subr.mxu0 0.0
    %191 = vmatpush1.msra.mxu0 %v84
    %192 = vmatprep.subr.mxu0 0.0
    %193 = vmatpush1.msra.mxu0 %v85
    %194 = vmatprep.subr.mxu0 0.0
    %195 = vmatpush1.msra.mxu0 %v86
    %196 = vmatprep.subr.mxu0 0.0
    %197 = vmatpush1.msra.mxu0 %v87
    %198 = vmatprep.subr.mxu0 0.0
    %199 = vmatpush1.msra.mxu0 %v88
    %200 = vmatprep.subr.mxu0 0.0
    %201 = vmatpush1.msra.mxu0 %v89
    %202 = vmatprep.subr.mxu0 0.0
    %203 = vmatpush1.msra.mxu0 %v90
    %204 = vmatprep.subr.mxu0 0.0
    %205 = vmatpush1.msra.mxu0 %v91
    %206 = vmatprep.subr.mxu0 0.0
    %207 = vmatpush1.msra.mxu0 %v92
    %208 = vmatprep.subr.mxu0 0.0
    %209 = vmatpush1.msra.mxu0 %v93
    %210 = vmatprep.subr.mxu0 0.0
    %211 = vmatpush1.msra.mxu0 %v94
    %212 = vmatprep.subr.mxu0 0.0
    %213 = vmatpush1.msra.mxu0 %v95
    %214 = vmatprep.subr.mxu0 0.0
    %215 = vmatpush1.msra.mxu0 0.0
    %216 = vmatprep.subr.mxu0 0.0
    %217 = vmatpush1.msra.mxu0 0.0
    %218 = vmatprep.subr.mxu0 0.0
    %219 = vmatpush1.msra.mxu0 0.0
    %220 = vmatprep.subr.mxu0 0.0
    %221 = vmatpush1.msra.mxu0 0.0
    %222 = vmatprep.subr.mxu0 0.0
    %223 = vmatpush1.msra.mxu0 0.0
    %224 = vmatprep.subr.mxu0 0.0
    %225 = vmatpush1.msra.mxu0 0.0
    %226 = vmatprep.subr.mxu0 0.0
    %227 = vmatpush1.msra.mxu0 0.0
    %228 = vmatprep.subr.mxu0 0.0
    %229 = vmatpush1.msra.mxu0 0.0
    %230 = vmatprep.subr.mxu0 0.0
    %231 = vmatpush1.msra.mxu0 0.0
    %232 = vmatprep.subr.mxu0 0.0
    %233 = vmatpush1.msra.mxu0 0.0
    %234 = vmatprep.subr.mxu0 0.0
    %235 = vmatpush1.msra.mxu0 0.0
    %236 = vmatprep.subr.mxu0 0.0
    %237 = vmatpush1.msra.mxu0 0.0
    %238 = vmatprep.subr.mxu0 0.0
    %239 = vmatpush1.msra.mxu0 0.0
    %240 = vmatprep.subr.mxu0 0.0
    %241 = vmatpush1.msra.mxu0 0.0
    %242 = vmatprep.subr.mxu0 0.0
    %243 = vmatpush1.msra.mxu0 0.0
    %244 = vmatprep.subr.mxu0 0.0
    %245 = vmatpush1.msra.mxu0 0.0
    %246 = vmatprep.mubr.f32.mxu0 0.0
    %247 = vmatmul.mubr.f32.gmra.mrb[0].mxu0 %v74
    %v248 = vpop.f32.mrb[0].mxu0
    %v249 = vadd.f32 %v97, %v248
    %v250 = vpop.f32.mrb[0].mxu0
    %251 = vdwg.mxu0
    %v252 = vadd.f32 %v174, %v96
    %v253 = vadd.f32 %v179, %v96
    %v256 = vunpack.c.l.s4 1966171168
    %v257 = vunpack.c.0.s8 %v256
    %v258 = vlaneseq
    %v259 = vshrl.u32 %v258, 7
    %v260 = vsub.s32 %v257, %v259
    %v261 = vrot.slane %v249, %v260
    %v262 = vcombine.high %v261, %v261
    %v264 = vunpack.c.l.s4 1966171168
    %v265 = vunpack.c.0.s8 %v264
    %v266 = vlaneseq
    %v267 = vshrl.u32 %v266, 7
    %v268 = vsub.s32 %v265, %v267
    %v269 = vrot.slane %v261, %v268
    %v271 = vunpack.c.l.s4 1966171168
    %v272 = vunpack.c.0.s8 %v271
    %v273 = vlaneseq
    %v274 = vshrl.u32 %v273, 7
    %v275 = vsub.s32 %v272, %v274
    %v276 = vrot.slane %v262, %v275
    %v277 = vlaneseq
    %v278 = vshrl.u32 %v277, 7
    %v279 = vsub.s32 0, %v278
    %v280 = vrot.slane %v269, %v279
    %v281 = vlaneseq
    %v282 = vshrl.u32 %v281, 7
    %v283 = vsub.s32 0, %v282
    %v284 = vrot.slane %v276, %v283
    %v287 = vadd.f32 %v252, %v280
    %v288 = vadd.f32 %v253, %v284
    %v289 = vtanh.pop %v287
    %v290 = vtanh.pop %v288
    %v291 = vmul.f32 %v289, %v98
    %v292 = vmul.f32 %v290, %v98
    %v293 = vsel %vm100, %v291, 0.0
    %294 = vadd.xlane.f32.xlu0 %v293
    %v295 = vpop.xlane.xlu0 %294
    %v296 = vsel %vm100, %v292, 0.0
    %297 = vadd.xlane.f32.xlu0 %v296
    %v298 = vpop.xlane.xlu0 %297
    %300 = vset.pattern.permute.xlu0 0
    %301 = vperm.xlu0 %300, %v99
    %v302 = vpop.permute.xlu0 %301
    %v304 = vadd.f32 %v295, %v302
    %v305 = vadd.f32 %v298, %v302
    %v308 = vlaneseq
    %v309 = vand.u32 %v308, 127
    %v310 = vlaneseq
    %v311 = vshrl.u32 %v310, 7
    %v312 = vsub.s32 %v309, %v311
    %v313 = vrot.slane %v304, %v312
    %v314 = vlaneseq
    %v315 = vshrl.u32 %v314, 7
    %v316 = vsub.s32 %v309, %v315
    %v317 = vrot.slane %v305, %v316
    %vm318 = vcmask 1041409
    %v319 = vsel %vm318, %v317, %v313
    %vm321 = vcmask 58368
    %v322 = vsel %vm321, %v319, -inf
    %323 = vmax.xlane.f32.xlu0 %v322
    %v324 = vpop.xlane.xlu0 %323
    %v326 = vlaneseq
    %v327 = vshrl.u32 %v326, 7
    %v328 = vsub.s32 0, %v327
    %v329 = vrot.slane %v324, %v328
    %v330 = vlaneseq
    %v331 = vshrl.u32 %v330, 7
    %v332 = vsub.s32 1, %v331
    %v333 = vrot.slane %v324, %v332
    %v336 = vsub.f32 %v304, %v329
    %v337 = vsub.f32 %v305, %v333
    %v338 = vmul.f32 %v336, 1.442695
    %v339 = vpow.pop %v338
    %v340 = vmul.f32 %v337, 1.442695
    %v341 = vpow.pop %v340
    %344 = vset.pattern.permute.xlu0 0
    %345 = vperm.xlu0 %344, %v339
    %v346 = vpop.permute.xlu0 %345
    %347 = vset.pattern.permute.xlu0 0
    %348 = vperm.xlu0 %347, %v341
    %v349 = vpop.permute.xlu0 %348
    %v350 = vlaneseq
    %v351 = vshrl.u32 %v350, 7
    %v352 = vsub.s32 %v309, %v351
    %v353 = vrot.slane %v346, %v352
    %v354 = vlaneseq
    %v355 = vshrl.u32 %v354, 7
    %v356 = vsub.s32 %v309, %v355
    %v357 = vrot.slane %v349, %v356
    %v358 = vsel %vm318, %v357, %v353
    %v360 = vsel %vm321, %v358, 0.0
    %361 = vadd.xlane.f32.xlu0 %v360
    %v362 = vpop.xlane.xlu0 %361
    %v364 = vlaneseq
    %v365 = vshrl.u32 %v364, 7
    %v366 = vsub.s32 0, %v365
    %v367 = vrot.slane %v362, %v366
    %v368 = vlaneseq
    %v369 = vshrl.u32 %v368, 7
    %v370 = vsub.s32 1, %v369
    %v371 = vrot.slane %v362, %v370
    %v374 = vrcp.pop %v367
    %v375 = vmul.f32 %v339, %v374
    %v376 = vrcp.pop %v371
    %v377 = vmul.f32 %v341, %v376
    %379 = vset.pattern.permute.xlu0 0
    %380 = vperm.xlu0 %379, %v375
    %v381 = vpop.permute.xlu0 %380
    %384 = vset.pattern.permute.xlu0 0
    %385 = vperm.xlu0 %384, %v377
    %v386 = vpop.permute.xlu0 %385
    %v388 = vmul.f32 %v381, %v72
    %v389 = vmul.f32 %v386, %v73
    %v390 = vsel %vm100, %v388, 0.0
    %v391 = vrot.slane %v390, 4
    %v392 = vadd.f32 %v390, %v391
    %v393 = vrot.slane %v392, 2
    %v394 = vadd.f32 %v392, %v393
    %v395 = vrot.slane %v394, 1
    %v396 = vadd.f32 %v394, %v395
    %v397 = vsel %vm100, %v389, 0.0
    %v398 = vrot.slane %v397, 4
    %v399 = vadd.f32 %v397, %v398
    %v400 = vrot.slane %v399, 2
    %v401 = vadd.f32 %v399, %v400
    %v402 = vrot.slane %v401, 1
    %v403 = vadd.f32 %v401, %v402
    %v406 = vsel %vm318, %v403, %v396
    %v408 = vsel %vm100, %v75, 0.0
    %v409 = vsel %vm100, %v406, 0.0
    %s410 = scalar_lea.vmem %s7, 4
    %v411 = vld [vmem:[%s410] ss:$8 sm:$0x7]
    %s412 = scalar_lea.vmem %s7, 5
    %v413 = vld [vmem:[%s412] ss:$8 sm:$0x7]
    %v414 = vld [vmem:[#allocation5] sm:$0xff]
    %v415 = vld [vmem:[#allocation5 + $0x8] sm:$0xff]
    %v416 = vld [vmem:[#allocation5 + $0x10] sm:$0xff]
    %v417 = vld [vmem:[#allocation5 + $0x18] sm:$0xff]
    %v418 = vld [vmem:[#allocation5 + $0x20] sm:$0xff]
    %v419 = vld [vmem:[#allocation5 + $0x28] sm:$0xff]
    %v420 = vld [vmem:[#allocation5 + $0x30] sm:$0xff]
    %v421 = vld [vmem:[#allocation5 + $0x38] sm:$0xff]
    %v422 = vld [vmem:[#allocation5 + $0x40] sm:$0xff]
    %v423 = vld [vmem:[#allocation5 + $0x48] sm:$0xff]
    %v424 = vld [vmem:[#allocation5 + $0x50] sm:$0xff]
    %v425 = vld [vmem:[#allocation5 + $0x58] sm:$0xff]
    %v426 = vld [vmem:[#allocation5 + $0x60] sm:$0xff]
    %v427 = vld [vmem:[#allocation5 + $0x68] sm:$0xff]
    %v428 = vld [vmem:[#allocation5 + $0x70] sm:$0xff]
    %v429 = vld [vmem:[#allocation5 + $0x78] sm:$0xff]
    %v430 = vld [vmem:[#allocation5 + $0x80] sm:$0xff]
    %v431 = vld [vmem:[#allocation5 + $0x88] sm:$0xff]
    %v432 = vld [vmem:[#allocation5 + $0x90] sm:$0xff]
    %v433 = vld [vmem:[#allocation5 + $0x98] sm:$0xff]
    %v434 = vld [vmem:[#allocation5 + $0xa0] sm:$0xff]
    %v435 = vld [vmem:[#allocation5 + $0xa8] sm:$0xff]
    %v436 = vld [vmem:[#allocation5 + $0xb0] sm:$0xff]
    %v437 = vld [vmem:[#allocation5 + $0xb8] sm:$0xff]
    %v438 = vld [vmem:[#allocation5 + $0xc0] sm:$0xff]
    %v439 = vld [vmem:[#allocation5 + $0xc8] sm:$0xff]
    %v440 = vld [vmem:[#allocation5 + $0xd0] sm:$0xff]
    %v441 = vld [vmem:[#allocation5 + $0xd8] sm:$0xff]
    %v442 = vld [vmem:[#allocation5 + $0xe0] sm:$0xff]
    %v443 = vld [vmem:[#allocation5 + $0xe8] sm:$0xff]
    %v444 = vld [vmem:[#allocation5 + $0xf0] sm:$0xff]
    %v445 = vld [vmem:[#allocation5 + $0xf8] sm:$0xff]
    %v446 = vld [vmem:[#allocation5 + $0x100] sm:$0xff]
    %v447 = vld [vmem:[#allocation5 + $0x108] sm:$0xff]
    %v448 = vld [vmem:[#allocation5 + $0x110] sm:$0xff]
    %v449 = vld [vmem:[#allocation5 + $0x118] sm:$0xff]
    %v450 = vld [vmem:[#allocation5 + $0x120] sm:$0xff]
    %v451 = vld [vmem:[#allocation5 + $0x128] sm:$0xff]
    %v452 = vld [vmem:[#allocation5 + $0x130] sm:$0xff]
    %v453 = vld [vmem:[#allocation5 + $0x138] sm:$0xff]
    %v454 = vld [vmem:[#allocation5 + $0x140] sm:$0xff]
    %v455 = vld [vmem:[#allocation5 + $0x148] sm:$0xff]
    %v456 = vld [vmem:[#allocation5 + $0x150] sm:$0xff]
    %v457 = vld [vmem:[#allocation5 + $0x158] sm:$0xff]
    %v458 = vld [vmem:[#allocation5 + $0x160] sm:$0xff]
    %v459 = vld [vmem:[#allocation5 + $0x168] sm:$0xff]
    %v460 = vld [vmem:[#allocation5 + $0x170] sm:$0xff]
    %v461 = vld [vmem:[#allocation5 + $0x178] sm:$0xff]
    %v462 = vld [vmem:[#allocation5 + $0x180] sm:$0xff]
    %v463 = vld [vmem:[#allocation5 + $0x188] sm:$0xff]
    %v464 = vld [vmem:[#allocation5 + $0x190] sm:$0xff]
    %v465 = vld [vmem:[#allocation5 + $0x198] sm:$0xff]
    %v466 = vld [vmem:[#allocation5 + $0x1a0] sm:$0xff]
    %v467 = vld [vmem:[#allocation5 + $0x1a8] sm:$0xff]
    %v468 = vld [vmem:[#allocation5 + $0x1b0] sm:$0xff]
    %v469 = vld [vmem:[#allocation5 + $0x1b8] sm:$0xff]
    %v470 = vld [vmem:[#allocation5 + $0x1c0] sm:$0xff]
    %v471 = vld [vmem:[#allocation5 + $0x1c8] sm:$0xff]
    %v472 = vld [vmem:[#allocation5 + $0x1d0] sm:$0xff]
    %v473 = vld [vmem:[#allocation5 + $0x1d8] sm:$0xff]
    %v474 = vld [vmem:[#allocation5 + $0x1e0] sm:$0xff]
    %v475 = vld [vmem:[#allocation5 + $0x1e8] sm:$0xff]
    %v476 = vld [vmem:[#allocation5 + $0x1f0] sm:$0xff]
    %v477 = vld [vmem:[#allocation5 + $0x1f8] sm:$0xff]
    %v478 = vld [vmem:[#allocation5 + $0x200] sm:$0xff]
    %v479 = vld [vmem:[#allocation5 + $0x208] sm:$0xff]
    %v480 = vld [vmem:[#allocation5 + $0x210] sm:$0xff]
    %v481 = vld [vmem:[#allocation5 + $0x218] sm:$0xff]
    %v482 = vld [vmem:[#allocation5 + $0x220] sm:$0xff]
    %v483 = vld [vmem:[#allocation5 + $0x228] sm:$0xff]
    %v484 = vld [vmem:[#allocation5 + $0x230] sm:$0xff]
    %v485 = vld [vmem:[#allocation5 + $0x238] sm:$0xff]
    %v486 = vld [vmem:[#allocation5 + $0x240] sm:$0xff]
    %v487 = vld [vmem:[#allocation5 + $0x248] sm:$0xff]
    %v488 = vld [vmem:[#allocation5 + $0x250] sm:$0xff]
    %v489 = vld [vmem:[#allocation5 + $0x258] sm:$0xff]
    %v490 = vld [vmem:[#allocation5 + $0x260] sm:$0xff]
    %v491 = vld [vmem:[#allocation5 + $0x268] sm:$0xff]
    %v492 = vld [vmem:[#allocation5 + $0x270] sm:$0xff]
    %v493 = vld [vmem:[#allocation5 + $0x278] sm:$0xff]
    %v494 = vld [vmem:[#allocation5 + $0x280] sm:$0xff]
    %v495 = vld [vmem:[#allocation5 + $0x288] sm:$0xff]
    %v496 = vld [vmem:[#allocation5 + $0x290] sm:$0xff]
    %v497 = vld [vmem:[#allocation5 + $0x298] sm:$0xff]
    %v498 = vld [vmem:[#allocation5 + $0x2a0] sm:$0xff]
    %v499 = vld [vmem:[#allocation5 + $0x2a8] sm:$0xff]
    %v500 = vld [vmem:[#allocation5 + $0x2b0] sm:$0xff]
    %v501 = vld [vmem:[#allocation5 + $0x2b8] sm:$0xff]
    %v502 = vld [vmem:[#allocation5 + $0x2c0] sm:$0xff]
    %v503 = vld [vmem:[#allocation5 + $0x2c8] sm:$0xff]
    %v504 = vld [vmem:[#allocation5 + $0x2d0] sm:$0xff]
    %v505 = vld [vmem:[#allocation5 + $0x2d8] sm:$0xff]
    %v506 = vld [vmem:[#allocation5 + $0x2e0] sm:$0xff]
    %v507 = vld [vmem:[#allocation5 + $0x2e8] sm:$0xff]
    %v508 = vld [vmem:[#allocation5 + $0x2f0] sm:$0xff]
    %v509 = vld [vmem:[#allocation5 + $0x2f8] sm:$0xff]
    %v511 = vlaneseq
    %v512 = vshrl.u32 %v511, 7
    %v513 = vsub.s32 0, %v512
    %v514 = vrot.slane %v411, %v513
    %v515 = vlaneseq
    %v516 = vshrl.u32 %v515, 7
    %v517 = vsub.s32 1, %v516
    %v518 = vrot.slane %v411, %v517
    %v519 = vlaneseq
    %v520 = vshrl.u32 %v519, 7
    %v521 = vsub.s32 2, %v520
    %v522 = vrot.slane %v411, %v521
    %526 = vmatprep.subr.mxu0 %v415
    %527 = vmatpush1.msra.mxu0 %v414
    %528 = vmatprep.subr.mxu0 %v418
    %529 = vmatpush1.msra.mxu0 %v417
    %530 = vmatprep.subr.mxu0 %v421
    %531 = vmatpush1.msra.mxu0 %v420
    %532 = vmatprep.subr.mxu0 %v424
    %533 = vmatpush1.msra.mxu0 %v423
    %534 = vmatprep.subr.mxu0 %v427
    %535 = vmatpush1.msra.mxu0 %v426
    %536 = vmatprep.subr.mxu0 %v430
    %537 = vmatpush1.msra.mxu0 %v429
    %538 = vmatprep.subr.mxu0 %v433
    %539 = vmatpush1.msra.mxu0 %v432
    %540 = vmatprep.subr.mxu0 %v436
    %541 = vmatpush1.msra.mxu0 %v435
    %542 = vmatprep.subr.mxu0 %v439
    %543 = vmatpush1.msra.mxu0 %v438
    %544 = vmatprep.subr.mxu0 %v442
    %545 = vmatpush1.msra.mxu0 %v441
    %546 = vmatprep.subr.mxu0 %v445
    %547 = vmatpush1.msra.mxu0 %v444
    %548 = vmatprep.subr.mxu0 %v448
    %549 = vmatpush1.msra.mxu0 %v447
    %550 = vmatprep.subr.mxu0 %v451
    %551 = vmatpush1.msra.mxu0 %v450
    %552 = vmatprep.subr.mxu0 %v454
    %553 = vmatpush1.msra.mxu0 %v453
    %554 = vmatprep.subr.mxu0 %v457
    %555 = vmatpush1.msra.mxu0 %v456
    %556 = vmatprep.subr.mxu0 %v460
    %557 = vmatpush1.msra.mxu0 %v459
    %558 = vmatprep.subr.mxu0 %v463
    %559 = vmatpush1.msra.mxu0 %v462
    %560 = vmatprep.subr.mxu0 %v466
    %561 = vmatpush1.msra.mxu0 %v465
    %562 = vmatprep.subr.mxu0 %v469
    %563 = vmatpush1.msra.mxu0 %v468
    %564 = vmatprep.subr.mxu0 %v472
    %565 = vmatpush1.msra.mxu0 %v471
    %566 = vmatprep.subr.mxu0 %v475
    %567 = vmatpush1.msra.mxu0 %v474
    %568 = vmatprep.subr.mxu0 %v478
    %569 = vmatpush1.msra.mxu0 %v477
    %570 = vmatprep.subr.mxu0 %v481
    %571 = vmatpush1.msra.mxu0 %v480
    %572 = vmatprep.subr.mxu0 %v484
    %573 = vmatpush1.msra.mxu0 %v483
    %574 = vmatprep.subr.mxu0 %v487
    %575 = vmatpush1.msra.mxu0 %v486
    %576 = vmatprep.subr.mxu0 %v490
    %577 = vmatpush1.msra.mxu0 %v489
    %578 = vmatprep.subr.mxu0 %v493
    %579 = vmatpush1.msra.mxu0 %v492
    %580 = vmatprep.subr.mxu0 %v496
    %581 = vmatpush1.msra.mxu0 %v495
    %582 = vmatprep.subr.mxu0 %v499
    %583 = vmatpush1.msra.mxu0 %v498
    %584 = vmatprep.subr.mxu0 %v502
    %585 = vmatpush1.msra.mxu0 %v501
    %586 = vmatprep.subr.mxu0 %v505
    %587 = vmatpush1.msra.mxu0 %v504
    %588 = vmatprep.subr.mxu0 %v508
    %589 = vmatpush1.msra.mxu0 %v507
    %590 = vmatprep.mubr.f32.mxu0 %v409
    %591 = vmatmul.mubr.f32.gmra.mrb[0].mxu0 %v408
    %v592 = vpop.f32.mrb[0].mxu0
    %v593 = vadd.f32 %v514, %v592
    %v594 = vpop.f32.mrb[0].mxu0
    %v595 = vadd.f32 %v518, %v594
    %596 = vdwg.mxu0
    %597 = vmatprep.subr.mxu0 0.0
    %598 = vmatpush1.msra.mxu0 %v416
    %599 = vmatprep.subr.mxu0 0.0
    %600 = vmatpush1.msra.mxu0 %v419
    %601 = vmatprep.subr.mxu0 0.0
    %602 = vmatpush1.msra.mxu0 %v422
    %603 = vmatprep.subr.mxu0 0.0
    %604 = vmatpush1.msra.mxu0 %v425
    %605 = vmatprep.subr.mxu0 0.0
    %606 = vmatpush1.msra.mxu0 %v428
    %607 = vmatprep.subr.mxu0 0.0
    %608 = vmatpush1.msra.mxu0 %v431
    %609 = vmatprep.subr.mxu0 0.0
    %610 = vmatpush1.msra.mxu0 %v434
    %611 = vmatprep.subr.mxu0 0.0
    %612 = vmatpush1.msra.mxu0 %v437
    %613 = vmatprep.subr.mxu0 0.0
    %614 = vmatpush1.msra.mxu0 %v440
    %615 = vmatprep.subr.mxu0 0.0
    %616 = vmatpush1.msra.mxu0 %v443
    %617 = vmatprep.subr.mxu0 0.0
    %618 = vmatpush1.msra.mxu0 %v446
    %619 = vmatprep.subr.mxu0 0.0
    %620 = vmatpush1.msra.mxu0 %v449
    %621 = vmatprep.subr.mxu0 0.0
    %622 = vmatpush1.msra.mxu0 %v452
    %623 = vmatprep.subr.mxu0 0.0
    %624 = vmatpush1.msra.mxu0 %v455
    %625 = vmatprep.subr.mxu0 0.0
    %626 = vmatpush1.msra.mxu0 %v458
    %627 = vmatprep.subr.mxu0 0.0
    %628 = vmatpush1.msra.mxu0 %v461
    %629 = vmatprep.subr.mxu0 0.0
    %630 = vmatpush1.msra.mxu0 %v464
    %631 = vmatprep.subr.mxu0 0.0
    %632 = vmatpush1.msra.mxu0 %v467
    %633 = vmatprep.subr.mxu0 0.0
    %634 = vmatpush1.msra.mxu0 %v470
    %635 = vmatprep.subr.mxu0 0.0
    %636 = vmatpush1.msra.mxu0 %v473
    %637 = vmatprep.subr.mxu0 0.0
    %638 = vmatpush1.msra.mxu0 %v476
    %639 = vmatprep.subr.mxu0 0.0
    %640 = vmatpush1.msra.mxu0 %v479
    %641 = vmatprep.subr.mxu0 0.0
    %642 = vmatpush1.msra.mxu0 %v482
    %643 = vmatprep.subr.mxu0 0.0
    %644 = vmatpush1.msra.mxu0 %v485
    %645 = vmatprep.subr.mxu0 0.0
    %646 = vmatpush1.msra.mxu0 %v488
    %647 = vmatprep.subr.mxu0 0.0
    %648 = vmatpush1.msra.mxu0 %v491
    %649 = vmatprep.subr.mxu0 0.0
    %650 = vmatpush1.msra.mxu0 %v494
    %651 = vmatprep.subr.mxu0 0.0
    %652 = vmatpush1.msra.mxu0 %v497
    %653 = vmatprep.subr.mxu0 0.0
    %654 = vmatpush1.msra.mxu0 %v500
    %655 = vmatprep.subr.mxu0 0.0
    %656 = vmatpush1.msra.mxu0 %v503
    %657 = vmatprep.subr.mxu0 0.0
    %658 = vmatpush1.msra.mxu0 %v506
    %659 = vmatprep.subr.mxu0 0.0
    %660 = vmatpush1.msra.mxu0 %v509
    %661 = vmatprep.mubr.f32.mxu0 %v409
    %662 = vmatmul.mubr.f32.gmra.mrb[0].mxu0 %v408
    %v663 = vpop.f32.mrb[0].mxu0
    %v664 = vadd.f32 %v522, %v663
    %v665 = vpop.f32.mrb[0].mxu0
    %666 = vdwg.mxu0
    %v667 = vld [vmem:[#allocation7] sm:$0xff]
    %v668 = vld [vmem:[#allocation7 + $0x8] sm:$0xff]
    %v669 = vld [vmem:[#allocation7 + $0x10] sm:$0xff]
    %v670 = vld [vmem:[#allocation7 + $0x18] sm:$0xff]
    %v671 = vld [vmem:[#allocation7 + $0x20] sm:$0xff]
    %v672 = vld [vmem:[#allocation7 + $0x28] sm:$0xff]
    %v673 = vld [vmem:[#allocation7 + $0x30] sm:$0xff]
    %v674 = vld [vmem:[#allocation7 + $0x38] sm:$0xff]
    %v675 = vld [vmem:[#allocation7 + $0x40] sm:$0xff]
    %v676 = vld [vmem:[#allocation7 + $0x48] sm:$0xff]
    %v677 = vld [vmem:[#allocation7 + $0x50] sm:$0xff]
    %v678 = vld [vmem:[#allocation7 + $0x58] sm:$0xff]
    %v679 = vld [vmem:[#allocation7 + $0x60] sm:$0xff]
    %v680 = vld [vmem:[#allocation7 + $0x68] sm:$0xff]
    %v681 = vld [vmem:[#allocation7 + $0x70] sm:$0xff]
    %v682 = vld [vmem:[#allocation7 + $0x78] sm:$0xff]
    %v683 = vld [vmem:[#allocation7 + $0x80] sm:$0xff]
    %v684 = vld [vmem:[#allocation7 + $0x88] sm:$0xff]
    %v685 = vld [vmem:[#allocation7 + $0x90] sm:$0xff]
    %v686 = vld [vmem:[#allocation7 + $0x98] sm:$0xff]
    %v687 = vld [vmem:[#allocation7 + $0xa0] sm:$0xff]
    %v688 = vld [vmem:[#allocation7 + $0xa8] sm:$0xff]
    %v689 = vld [vmem:[#allocation7 + $0xb0] sm:$0xff]
    %v690 = vld [vmem:[#allocation7 + $0xb8] sm:$0xff]
    %v691 = vld [vmem:[#allocation7 + $0xc0] sm:$0xff]
    %v692 = vld [vmem:[#allocation7 + $0xc8] sm:$0xff]
    %v693 = vld [vmem:[#allocation7 + $0xd0] sm:$0xff]
    %v694 = vld [vmem:[#allocation7 + $0xd8] sm:$0xff]
    %v695 = vld [vmem:[#allocation7 + $0xe0] sm:$0xff]
    %v696 = vld [vmem:[#allocation7 + $0xe8] sm:$0xff]
    %v697 = vld [vmem:[#allocation7 + $0xf0] sm:$0xff]
    %v698 = vld [vmem:[#allocation7 + $0xf8] sm:$0xff]
    %v699 = vld [vmem:[#allocation7 + $0x100] sm:$0xff]
    %v700 = vld [vmem:[#allocation7 + $0x108] sm:$0xff]
    %v701 = vld [vmem:[#allocation7 + $0x110] sm:$0xff]
    %v702 = vld [vmem:[#allocation7 + $0x118] sm:$0xff]
    %v703 = vld [vmem:[#allocation7 + $0x120] sm:$0xff]
    %v704 = vld [vmem:[#allocation7 + $0x128] sm:$0xff]
    %v705 = vld [vmem:[#allocation7 + $0x130] sm:$0xff]
    %v706 = vld [vmem:[#allocation7 + $0x138] sm:$0xff]
    %v707 = vld [vmem:[#allocation7 + $0x140] sm:$0xff]
    %v708 = vld [vmem:[#allocation7 + $0x148] sm:$0xff]
    %v709 = vld [vmem:[#allocation7 + $0x150] sm:$0xff]
    %v710 = vld [vmem:[#allocation7 + $0x158] sm:$0xff]
    %v711 = vld [vmem:[#allocation7 + $0x160] sm:$0xff]
    %v712 = vld [vmem:[#allocation7 + $0x168] sm:$0xff]
    %v713 = vld [vmem:[#allocation7 + $0x170] sm:$0xff]
    %v714 = vld [vmem:[#allocation7 + $0x178] sm:$0xff]
    %v716 = vlaneseq
    %v717 = vshrl.u32 %v716, 7
    %v718 = vsub.s32 0, %v717
    %v719 = vrot.slane %v413, %v718
    %v720 = vlaneseq
    %v721 = vshrl.u32 %v720, 7
    %v722 = vsub.s32 1, %v721
    %v723 = vrot.slane %v413, %v722
    %v724 = vlaneseq
    %v725 = vshrl.u32 %v724, 7
    %v726 = vsub.s32 2, %v725
    %v727 = vrot.slane %v413, %v726
    %731 = vmatprep.subr.mxu0 %v668
    %732 = vmatpush1.msra.mxu0 %v667
    %733 = vmatprep.subr.mxu0 %v671
    %734 = vmatpush1.msra.mxu0 %v670
    %735 = vmatprep.subr.mxu0 %v674
    %736 = vmatpush1.msra.mxu0 %v673
    %737 = vmatprep.subr.mxu0 %v677
    %738 = vmatpush1.msra.mxu0 %v676
    %739 = vmatprep.subr.mxu0 %v680
    %740 = vmatpush1.msra.mxu0 %v679
    %741 = vmatprep.subr.mxu0 %v683
    %742 = vmatpush1.msra.mxu0 %v682
    %743 = vmatprep.subr.mxu0 %v686
    %744 = vmatpush1.msra.mxu0 %v685
    %745 = vmatprep.subr.mxu0 %v689
    %746 = vmatpush1.msra.mxu0 %v688
    %747 = vmatprep.subr.mxu0 %v692
    %748 = vmatpush1.msra.mxu0 %v691
    %749 = vmatprep.subr.mxu0 %v695
    %750 = vmatpush1.msra.mxu0 %v694
    %751 = vmatprep.subr.mxu0 %v698
    %752 = vmatpush1.msra.mxu0 %v697
    %753 = vmatprep.subr.mxu0 %v701
    %754 = vmatpush1.msra.mxu0 %v700
    %755 = vmatprep.subr.mxu0 %v704
    %756 = vmatpush1.msra.mxu0 %v703
    %757 = vmatprep.subr.mxu0 %v707
    %758 = vmatpush1.msra.mxu0 %v706
    %759 = vmatprep.subr.mxu0 %v710
    %760 = vmatpush1.msra.mxu0 %v709
    %761 = vmatprep.subr.mxu0 %v713
    %762 = vmatpush1.msra.mxu0 %v712
    %763 = vmatprep.subr.mxu0 0.0
    %764 = vmatpush1.msra.mxu0 0.0
    %765 = vmatprep.subr.mxu0 0.0
    %766 = vmatpush1.msra.mxu0 0.0
    %767 = vmatprep.subr.mxu0 0.0
    %768 = vmatpush1.msra.mxu0 0.0
    %769 = vmatprep.subr.mxu0 0.0
    %770 = vmatpush1.msra.mxu0 0.0
    %771 = vmatprep.subr.mxu0 0.0
    %772 = vmatpush1.msra.mxu0 0.0
    %773 = vmatprep.subr.mxu0 0.0
    %774 = vmatpush1.msra.mxu0 0.0
    %775 = vmatprep.subr.mxu0 0.0
    %776 = vmatpush1.msra.mxu0 0.0
    %777 = vmatprep.subr.mxu0 0.0
    %778 = vmatpush1.msra.mxu0 0.0
    %779 = vmatprep.subr.mxu0 0.0
    %780 = vmatpush1.msra.mxu0 0.0
    %781 = vmatprep.subr.mxu0 0.0
    %782 = vmatpush1.msra.mxu0 0.0
    %783 = vmatprep.subr.mxu0 0.0
    %784 = vmatpush1.msra.mxu0 0.0
    %785 = vmatprep.subr.mxu0 0.0
    %786 = vmatpush1.msra.mxu0 0.0
    %787 = vmatprep.subr.mxu0 0.0
    %788 = vmatpush1.msra.mxu0 0.0
    %789 = vmatprep.subr.mxu0 0.0
    %790 = vmatpush1.msra.mxu0 0.0
    %791 = vmatprep.subr.mxu0 0.0
    %792 = vmatpush1.msra.mxu0 0.0
    %793 = vmatprep.subr.mxu0 0.0
    %794 = vmatpush1.msra.mxu0 0.0
    %795 = vmatprep.mubr.f32.mxu0 0.0
    %796 = vmatmul.mubr.f32.gmra.mrb[0].mxu0 %v74
    %v797 = vpop.f32.mrb[0].mxu0
    %v798 = vadd.f32 %v719, %v797
    %v799 = vpop.f32.mrb[0].mxu0
    %v800 = vadd.f32 %v723, %v799
    %801 = vdwg.mxu0
    %802 = vmatprep.subr.mxu0 0.0
    %803 = vmatpush1.msra.mxu0 %v669
    %804 = vmatprep.subr.mxu0 0.0
    %805 = vmatpush1.msra.mxu0 %v672
    %806 = vmatprep.subr.mxu0 0.0
    %807 = vmatpush1.msra.mxu0 %v675
    %808 = vmatprep.subr.mxu0 0.0
    %809 = vmatpush1.msra.mxu0 %v678
    %810 = vmatprep.subr.mxu0 0.0
    %811 = vmatpush1.msra.mxu0 %v681
    %812 = vmatprep.subr.mxu0 0.0
    %813 = vmatpush1.msra.mxu0 %v684
    %814 = vmatprep.subr.mxu0 0.0
    %815 = vmatpush1.msra.mxu0 %v687
    %816 = vmatprep.subr.mxu0 0.0
    %817 = vmatpush1.msra.mxu0 %v690
    %818 = vmatprep.subr.mxu0 0.0
    %819 = vmatpush1.msra.mxu0 %v693
    %820 = vmatprep.subr.mxu0 0.0
    %821 = vmatpush1.msra.mxu0 %v696
    %822 = vmatprep.subr.mxu0 0.0
    %823 = vmatpush1.msra.mxu0 %v699
    %824 = vmatprep.subr.mxu0 0.0
    %825 = vmatpush1.msra.mxu0 %v702
    %826 = vmatprep.subr.mxu0 0.0
    %827 = vmatpush1.msra.mxu0 %v705
    %828 = vmatprep.subr.mxu0 0.0
    %829 = vmatpush1.msra.mxu0 %v708
    %830 = vmatprep.subr.mxu0 0.0
    %831 = vmatpush1.msra.mxu0 %v711
    %832 = vmatprep.subr.mxu0 0.0
    %833 = vmatpush1.msra.mxu0 %v714
    %834 = vmatprep.subr.mxu0 0.0
    %835 = vmatpush1.msra.mxu0 0.0
    %836 = vmatprep.subr.mxu0 0.0
    %837 = vmatpush1.msra.mxu0 0.0
    %838 = vmatprep.subr.mxu0 0.0
    %839 = vmatpush1.msra.mxu0 0.0
    %840 = vmatprep.subr.mxu0 0.0
    %841 = vmatpush1.msra.mxu0 0.0
    %842 = vmatprep.subr.mxu0 0.0
    %843 = vmatpush1.msra.mxu0 0.0
    %844 = vmatprep.subr.mxu0 0.0
    %845 = vmatpush1.msra.mxu0 0.0
    %846 = vmatprep.subr.mxu0 0.0
    %847 = vmatpush1.msra.mxu0 0.0
    %848 = vmatprep.subr.mxu0 0.0
    %849 = vmatpush1.msra.mxu0 0.0
    %850 = vmatprep.subr.mxu0 0.0
    %851 = vmatpush1.msra.mxu0 0.0
    %852 = vmatprep.subr.mxu0 0.0
    %853 = vmatpush1.msra.mxu0 0.0
    %854 = vmatprep.subr.mxu0 0.0
    %855 = vmatpush1.msra.mxu0 0.0
    %856 = vmatprep.subr.mxu0 0.0
    %857 = vmatpush1.msra.mxu0 0.0
    %858 = vmatprep.subr.mxu0 0.0
    %859 = vmatpush1.msra.mxu0 0.0
    %860 = vmatprep.subr.mxu0 0.0
    %861 = vmatpush1.msra.mxu0 0.0
    %862 = vmatprep.subr.mxu0 0.0
    %863 = vmatpush1.msra.mxu0 0.0
    %864 = vmatprep.subr.mxu0 0.0
    %865 = vmatpush1.msra.mxu0 0.0
    %866 = vmatprep.mubr.f32.mxu0 0.0
    %867 = vmatmul.mubr.f32.gmra.mrb[0].mxu0 %v74
    %v868 = vpop.f32.mrb[0].mxu0
    %v869 = vadd.f32 %v727, %v868
    %v870 = vpop.f32.mrb[0].mxu0
    %871 = vdwg.mxu0
    %v872 = vadd.f32 %v593, %v798
    %v873 = vxor.u32 %v872, 2147483648
    %v874 = vmul.f32 %v873, 1.442695
    %v875 = vpow.pop %v874
    %v876 = vadd.f32 %v875, 1.0
    %v877 = vrcp.pop %v876
    %v878 = vmul.f32 1.0, %v877
    %v879 = vadd.f32 %v595, %v800
    %v880 = vxor.u32 %v879, 2147483648
    %v881 = vmul.f32 %v880, 1.442695
    %v882 = vpow.pop %v881
    %v883 = vadd.f32 %v882, 1.0
    %v884 = vrcp.pop %v883
    %v885 = vmul.f32 1.0, %v884
    %v886 = vmul.f32 %v878, %v869
    %v887 = vadd.f32 %v664, %v886
    %v888 = vtanh.pop %v887
    %v889 = vsub.f32 1.0, %v885
    %v890 = vmul.f32 %v889, %v888
    %v891 = vmul.f32 %v885, %v74
    %v892 = vadd.f32 %v890, %v891
    %893 = vst [vmem:[#allocation9] sm:$0x3] %v892
    %v894 = vld [vmem:[%s6] sm:$0xff]
    %v895 = vld [vmem:[%s6 + $0x8] sm:$0xff]
    %v896 = vld [vmem:[%s6 + $0x10] sm:$0xff]
    %v897 = vld [vmem:[%s6 + $0x18] sm:$0xff]
    %v898 = vld [vmem:[%s6 + $0x20] sm:$0xff]
    %v899 = vld [vmem:[%s6 + $0x28] sm:$0xff]
    %v900 = vld [vmem:[%s6 + $0x30] sm:$0xff]
    %v901 = vld [vmem:[%s6 + $0x38] sm:$0xff]
    %v902 = vld [vmem:[%s6 + $0x40] sm:$0xff]
    %v903 = vld [vmem:[%s6 + $0x48] sm:$0xff]
    %v904 = vld [vmem:[%s6 + $0x50] sm:$0xff]
    %v905 = vld [vmem:[%s6 + $0x58] sm:$0xff]
    %v906 = vld [vmem:[%s6 + $0x60] sm:$0xff]
    %v907 = vld [vmem:[%s6 + $0x68] sm:$0xff]
    %v908 = vld [vmem:[%s6 + $0x70] sm:$0xff]
    %v909 = vld [vmem:[%s6 + $0x78] sm:$0xff]
    %v910 = vld [vmem:[%s7 + $0x6] ss:$0 sm:$0xff]
    %911 = vmatprep.subr.mxu0 0.0
    %912 = vmatpush1.msra.mxu0 %v894
    %913 = vmatprep.subr.mxu0 0.0
    %914 = vmatpush1.msra.mxu0 %v895
    %915 = vmatprep.subr.mxu0 0.0
    %916 = vmatpush1.msra.mxu0 %v896
    %917 = vmatprep.subr.mxu0 0.0
    %918 = vmatpush1.msra.mxu0 %v897
    %919 = vmatprep.subr.mxu0 0.0
    %920 = vmatpush1.msra.mxu0 %v898
    %921 = vmatprep.subr.mxu0 0.0
    %922 = vmatpush1.msra.mxu0 %v899
    %923 = vmatprep.subr.mxu0 0.0
    %924 = vmatpush1.msra.mxu0 %v900
    %925 = vmatprep.subr.mxu0 0.0
    %926 = vmatpush1.msra.mxu0 %v901
    %927 = vmatprep.subr.mxu0 0.0
    %928 = vmatpush1.msra.mxu0 %v902
    %929 = vmatprep.subr.mxu0 0.0
    %930 = vmatpush1.msra.mxu0 %v903
    %931 = vmatprep.subr.mxu0 0.0
    %932 = vmatpush1.msra.mxu0 %v904
    %933 = vmatprep.subr.mxu0 0.0
    %934 = vmatpush1.msra.mxu0 %v905
    %935 = vmatprep.subr.mxu0 0.0
    %936 = vmatpush1.msra.mxu0 %v906
    %937 = vmatprep.subr.mxu0 0.0
    %938 = vmatpush1.msra.mxu0 %v907
    %939 = vmatprep.subr.mxu0 0.0
    %940 = vmatpush1.msra.mxu0 %v908
    %941 = vmatprep.subr.mxu0 0.0
    %942 = vmatpush1.msra.mxu0 %v909
    %943 = vmatprep.subr.mxu0 0.0
    %944 = vmatpush1.msra.mxu0 0.0
    %945 = vmatprep.subr.mxu0 0.0
    %946 = vmatpush1.msra.mxu0 0.0
    %947 = vmatprep.subr.mxu0 0.0
    %948 = vmatpush1.msra.mxu0 0.0
    %949 = vmatprep.subr.mxu0 0.0
    %950 = vmatpush1.msra.mxu0 0.0
    %951 = vmatprep.subr.mxu0 0.0
    %952 = vmatpush1.msra.mxu0 0.0
    %953 = vmatprep.subr.mxu0 0.0
    %954 = vmatpush1.msra.mxu0 0.0
    %955 = vmatprep.subr.mxu0 0.0
    %956 = vmatpush1.msra.mxu0 0.0
    %957 = vmatprep.subr.mxu0 0.0
    %958 = vmatpush1.msra.mxu0 0.0
    %959 = vmatprep.subr.mxu0 0.0
    %960 = vmatpush1.msra.mxu0 0.0
    %961 = vmatprep.subr.mxu0 0.0
    %962 = vmatpush1.msra.mxu0 0.0
    %963 = vmatprep.subr.mxu0 0.0
    %964 = vmatpush1.msra.mxu0 0.0
    %965 = vmatprep.subr.mxu0 0.0
    %966 = vmatpush1.msra.mxu0 0.0
    %967 = vmatprep.subr.mxu0 0.0
    %968 = vmatpush1.msra.mxu0 0.0
    %969 = vmatprep.subr.mxu0 0.0
    %970 = vmatpush1.msra.mxu0 0.0
    %971 = vmatprep.subr.mxu0 0.0
    %972 = vmatpush1.msra.mxu0 0.0
    %973 = vmatprep.subr.mxu0 0.0
    %974 = vmatpush1.msra.mxu0 0.0
    %975 = vmatprep.mubr.f32.mxu0 0.0
    %976 = vmatmul.mubr.f32.gmra.mrb[0].mxu0 %v892
    %v977 = vpop.f32.mrb[0].mxu0
    %v978 = vadd.f32 %v910, %v977
    %v979 = vpop.f32.mrb[0].mxu0
    %980 = vdwg.mxu0
    %981 = vst [vmem:[#allocation8] sm:$0x3] %v978
    // Predicated region
    $region46: #{tpu_custom_call.1} parent=1 // pred_check
      _
    $region47: #{tpu_custom_call.1} parent=1 // pred_check_branch
      %983 = sbr.rel (0) target = $region49
    $region48: #{tpu_custom_call.1} parent=1 // pred_region
      %s985 = ssub.s32 32, 32
      %986 = vsyncadd [#allocation4], %s985
      %s988 = sshll.u32 [#allocation8], 4
      %s989 = int_to_ptr.vmem [resolvable:$true] %s988
      %991 = dma.vmem_to_hbm [thread:$0]  %s989, 32, %s8, [#allocation4]
    $region49: #{tpu_custom_call.1} parent=1 // pred_fallthru
      _
    // Predicated region
    $region50: #{tpu_custom_call.1} parent=1 // pred_check
      _
    $region51: #{tpu_custom_call.1} parent=1 // pred_check_branch
      %993 = sbr.rel (0) target = $region53
    $region52: #{tpu_custom_call.1} parent=1 // pred_region
      %s995 = ssub.s32 32, 32
      %996 = vsyncadd [#allocation10], %s995
      %s998 = sshll.u32 [#allocation9], 4
      %s999 = int_to_ptr.vmem [resolvable:$true] %s998
      %1001 = dma.vmem_to_hbm [thread:$0]  %s999, 32, %s9, [#allocation10]
    $region53: #{tpu_custom_call.1} parent=1 // pred_fallthru
      _
    // Predicated region
    $region54: #{tpu_custom_call.1} parent=1 // pred_check
      _
    $region55: #{tpu_custom_call.1} parent=1 // pred_check_branch
      %1003 = sbr.rel (0) target = $region57
    $region56: #{tpu_custom_call.1} parent=1 // pred_region
      %1004 = dma.done [#allocation4], 32
    $region57: #{tpu_custom_call.1} parent=1 // pred_fallthru
      _
    // Predicated region
    $region58: #{tpu_custom_call.1} parent=1 // pred_check
      _
    $region59: #{tpu_custom_call.1} parent=1 // pred_check_branch
      %1006 = sbr.rel (0) target = $region61
    $region60: #{tpu_custom_call.1} parent=1 // pred_region
      %1007 = dma.done [#allocation10], 32
    $region61: #{tpu_custom_call.1} parent=1 // pred_fallthru
      _
    %1008 = vsyncpa [#allocation3], 1
    %1009 = vsyncpa [#allocation6], 1
    %1010 = vsyncpa [#allocation4], 1
    %1011 = vsyncpa [#allocation10], 1

</llo_original>
